<compile_context>
chip_gen: v7x
topology: tpu7x:2x2x1
jax: 0.10.0
libtpu: 0.0.40
codegen_flags: <defaults>
</compile_context>

<pallas_src>
import jax
import jax.numpy as jnp
from jax.experimental import pallas as pl
from jax.experimental.pallas import tpu as pltpu

OBS_DIM = 4
ACT_DIM = 1
IN_DIM = OBS_DIM + ACT_DIM   # 5
HID = 8
OUT_DIM = OBS_DIM            # 4

LANE = 128                    # lane width: batch tiles are multiples of this
MAX_BLOCK_B = 32768           # default batch tile; sweep 8K-64K per generation
MIN_PALLAS_BATCH = 512        # below this, plain XLA wins (overhead dominated)


def _round_up(n, m):
    return ((n + m - 1) // m) * m


def mlp_kernel(x_ref, w1_ref, b1_ref, w2_ref, b2_ref, w3_ref, b3_ref, o_ref):
    # Feature-major layout: batch on lanes.  Each jnp.dot is (out, in) @ (in, TB)
    # with low-precision operands and f32 accumulation.  Bias add + tanh run in
    # f32 (safe on v5e, which has no bf16 VPU/EUP).
    cdt = w1_ref.dtype
    x = x_ref[...]                                                    # (IN, TB)
    h1 = jnp.tanh(
        jnp.dot(w1_ref[...], x, preferred_element_type=jnp.float32) + b1_ref[...]
    )                                                                 # (HID, TB) f32
    h2 = jnp.tanh(
        jnp.dot(w2_ref[...], h1.astype(cdt), preferred_element_type=jnp.float32)
        + b2_ref[...]
    )                                                                 # (HID, TB) f32
    o_ref[...] = (
        jnp.dot(w3_ref[...], h2.astype(cdt), preferred_element_type=jnp.float32)
        + b3_ref[...]
    )                                                                 # (OUT, TB) f32


def mlp_forward_fm(x_fm, params, *, block_b=None, io_dtype=jnp.bfloat16):
    """Feature-major fast path.

    x_fm: (IN_DIM, B).  Returns (OUT_DIM, B) float32.  Callers that keep their
    activations feature-major end-to-end pay zero wrapper transposes.
    """
    in_dim, B = x_fm.shape
    assert in_dim == IN_DIM
    io_dtype = jnp.dtype(io_dtype)

    w1 = params["w1"].astype(io_dtype)
    w2 = params["w2"].astype(io_dtype)
    w3 = params["w3"].astype(io_dtype)
    b1 = params["b1"].astype(jnp.float32)
    b2 = params["b2"].astype(jnp.float32)
    b3 = params["b3"].astype(jnp.float32)

    # Lane-aligned batch tile.
    target = _round_up(max(B, 1), LANE)
    if block_b is None:
        block_b = min(MAX_BLOCK_B, target)
    block_b = max(LANE, _round_up(block_b, LANE))
    # v7x megacore: guarantee >= 2 grid steps whenever the batch allows, so
    # dimension_semantics=("parallel",) actually engages both TensorCores.
    if target // block_b < 2 and target >= 2 * LANE:
        block_b = _round_up((target + 1) // 2, LANE)
    Bp = _round_up(B, block_b)

    # Cast (and pad, if needed) in one fused XLA pass.
    xt = x_fm.astype(io_dtype)
    if Bp != B:
        xt = jnp.pad(xt, ((0, 0), (0, Bp - B)))                       # (IN, Bp)

    grid = (Bp // block_b,)

    def resident(a):  # whole array resident in VMEM, same block every step
        return pl.BlockSpec(a.shape, lambda i: (0,) * a.ndim)

    # Scoped-VMEM estimate (per grid step): double-buffered x/out tiles plus a
    # generous bound on h1/h2 (+ their low-precision copies).  Only override
    # the compiler default when a very large block_b actually needs it (v5e's
    # default is 16 MiB; v7x has 64 MiB physical per TC).
    per_step_bytes = block_b * (
        2 * IN_DIM * io_dtype.itemsize      # x tile, double buffered
        + 2 * OUT_DIM * 4                   # out tile (f32), double buffered
        + 4 * HID * 4                       # h1/h2 f32 + casts (upper bound)
    )
    cp_kwargs = dict(dimension_semantics=("parallel",))
    if per_step_bytes > 12 * 1024 * 1024:
        cp_kwargs["vmem_limit_bytes"] = min(
            int(per_step_bytes * 1.5) + (2 << 20), 48 * 1024 * 1024
        )

    param_bytes = int(sum(p.size for p in (w1, w2, w3)) * io_dtype.itemsize
                      + sum(p.size for p in (b1, b2, b3)) * 4)
    flops = 2 * Bp * (IN_DIM * HID + HID * HID + HID * OUT_DIM)
    bytes_accessed = int(Bp * IN_DIM * io_dtype.itemsize
                         + Bp * OUT_DIM * 4 + param_bytes)

    out_fm = pl.pallas_call(
        mlp_kernel,
        out_shape=jax.ShapeDtypeStruct((OUT_DIM, Bp), jnp.float32),
        grid=grid,
        in_specs=[
            pl.BlockSpec((IN_DIM, block_b), lambda i: (0, i)),
            resident(w1), resident(b1),
            resident(w2), resident(b2),
            resident(w3), resident(b3),
        ],
        out_specs=pl.BlockSpec((OUT_DIM, block_b), lambda i: (0, i)),
        compiler_params=pltpu.CompilerParams(**cp_kwargs),
        cost_estimate=pl.CostEstimate(
            flops=flops,
            transcendentals=2 * HID * Bp,
            bytes_accessed=bytes_accessed,
        ),
    )(xt, w1, b1, w2, b2, w3, b3)

    return out_fm[:, :B]


def mlp_forward(x, params, *, block_b=None, io_dtype=jnp.bfloat16,
                min_pallas_batch=MIN_PALLAS_BATCH):
    """PyTorch-layout entry point.  x: (B, IN_DIM) -> (B, OUT_DIM) float32."""
    B = x.shape[0]
    if B < min_pallas_batch:
        # Production PPO lookahead uses B~8: lane padding + kernel launch
        # overhead make Pallas a loss there; plain XLA is faster and exact.
        return mlp_reference(x, params)
    out_fm = mlp_forward_fm(x.T, params, block_b=block_b, io_dtype=io_dtype)
    return out_fm.T


def init_params(key):
    """Deterministic init mimicking nn.Linear.

    Weights in PyTorch (out, in) layout (kernel computes W @ x); biases stored
    as column vectors (out, 1) so they broadcast against (out, batch_tile).
    """
    keys = jax.random.split(key, 6)

    def linear(kw, kb, fan_in, fan_out):
        bound = 1.0 / jnp.sqrt(jnp.float32(fan_in))
        w = jax.random.uniform(kw, (fan_out, fan_in), jnp.float32, -bound, bound)
        b = jax.random.uniform(kb, (fan_out, 1), jnp.float32, -bound, bound)
        return w, b

    w1, b1 = linear(keys[0], keys[1], IN_DIM, HID)
    w2, b2 = linear(keys[2], keys[3], HID, HID)
    w3, b3 = linear(keys[4], keys[5], HID, OUT_DIM)
    return {"w1": w1, "b1": b1, "w2": w2, "b2": b2, "w3": w3, "b3": b3}


def mlp_reference(x, params):
    """Pure-JAX f32 reference of the PyTorch forward."""
    h1 = jnp.tanh(x @ params["w1"].T + params["b1"].T)
    h2 = jnp.tanh(h1 @ params["w2"].T + params["b2"].T)
    return h2 @ params["w3"].T + params["b3"].T


if __name__ == "__main__":
    key = jax.random.PRNGKey(0)
    k_params, k_x = jax.random.split(key)
    params = init_params(k_params)

    # Small single-tile batch, forced down the Pallas path (bf16 MXU inputs).
    B = 8
    x = jax.random.normal(k_x, (B, IN_DIM), jnp.float32)
    ref = mlp_reference(x, params)

    out = jax.block_until_ready(mlp_forward(x, params, min_pallas_batch=0))
    assert out.shape == (B, OUT_DIM)
    assert jnp.allclose(out, ref, atol=5e-2, rtol=5e-2)  # bf16 operand tolerance

    # Same kernel with f32 I/O: exact parity with the reference.
    out32 = jax.block_until_ready(
        mlp_forward(x, params, min_pallas_batch=0, io_dtype=jnp.float32))
    assert jnp.allclose(out32, ref, atol=1e-5, rtol=1e-5)

    # Multi-tile grid + batch padding (non-multiple-of-128 batch, 3 grid steps).
    B2 = 300
    x2 = jax.random.normal(jax.random.PRNGKey(1), (B2, IN_DIM), jnp.float32)
    out2 = jax.block_until_ready(
        mlp_forward(x2, params, block_b=128, min_pallas_batch=0))
    ref2 = mlp_reference(x2, params)
    assert out2.shape == (B2, OUT_DIM)
    assert jnp.allclose(out2, ref2, atol=5e-2, rtol=5e-2)

    # Tiny-batch production path dispatches to plain XLA (exact).
    out_small = jax.block_until_ready(mlp_forward(x, params))
    assert jnp.allclose(out_small, ref, atol=1e-5, rtol=1e-5)

    print("KERNEL_OK")
</pallas_src>

<mosaic_0001>
module attributes {stable_mosaic.version = 11 : i64} {
  func.func @mlp_kernel(%arg0: i32, %arg1: memref<5x128xbf16, #tpu.memory_space<vmem>>, %arg2: memref<8x5xbf16, #tpu.memory_space<vmem>>, %arg3: memref<8x1xf32, #tpu.memory_space<vmem>>, %arg4: memref<8x8xbf16, #tpu.memory_space<vmem>>, %arg5: memref<8x1xf32, #tpu.memory_space<vmem>>, %arg6: memref<4x8xbf16, #tpu.memory_space<vmem>>, %arg7: memref<4x1xf32, #tpu.memory_space<vmem>>, %arg8: memref<4x128xf32, #tpu.memory_space<vmem>>) attributes {dimension_semantics = [#tpu.dimension_semantics<parallel>], iteration_bounds = array<i64: 1>, scalar_prefetch = 0 : i64, scratch_operands = 0 : i64, tpu.core_type = #tpu.core_type<tc>, window_params = [{transform_indices = @transform_0, window_bounds = array<i64: 5, 128>}, {pipeline_mode = #tpu.pipeline_mode<synchronous>, transform_indices = @transform_1, window_bounds = array<i64: 8, 5>}, {pipeline_mode = #tpu.pipeline_mode<synchronous>, transform_indices = @transform_2, window_bounds = array<i64: 8, 1>}, {pipeline_mode = #tpu.pipeline_mode<synchronous>, transform_indices = @transform_3, window_bounds = array<i64: 8, 8>}, {pipeline_mode = #tpu.pipeline_mode<synchronous>, transform_indices = @transform_4, window_bounds = array<i64: 8, 1>}, {pipeline_mode = #tpu.pipeline_mode<synchronous>, transform_indices = @transform_5, window_bounds = array<i64: 4, 8>}, {pipeline_mode = #tpu.pipeline_mode<synchronous>, transform_indices = @transform_6, window_bounds = array<i64: 4, 1>}, {transform_indices = @transform_7, window_bounds = array<i64: 4, 128>}]} {
    %c0 = arith.constant 0 : index
    %c0_0 = arith.constant 0 : index
    %0 = vector.load %arg1[%c0, %c0_0] : memref<5x128xbf16, #tpu.memory_space<vmem>>, vector<5x128xbf16>
    %c0_1 = arith.constant 0 : index
    %c0_2 = arith.constant 0 : index
    %1 = vector.load %arg2[%c0_1, %c0_2] : memref<8x5xbf16, #tpu.memory_space<vmem>>, vector<8x5xbf16>
    %cst = arith.constant dense<0.000000e+00> : vector<8x128xf32>
    %2 = tpu.matmul %1, %0, %cst {dimension_numbers = #tpu.dot_dimension_numbers<[1], [0], [0], [1], [0, 0, 1, 1], [], []>} : vector<8x5xbf16>, vector<5x128xbf16>, vector<8x128xf32> -> vector<8x128xf32>
    %c0_3 = arith.constant 0 : index
    %c0_4 = arith.constant 0 : index
    %3 = vector.load %arg3[%c0_3, %c0_4] : memref<8x1xf32, #tpu.memory_space<vmem>>, vector<8x1xf32>
    %4 = vector.broadcast %3 : vector<8x1xf32> to vector<8x128xf32>
    %5 = arith.addf %2, %4 : vector<8x128xf32>
    %6 = math.tanh %5 : vector<8x128xf32>
    %c0_5 = arith.constant 0 : index
    %c0_6 = arith.constant 0 : index
    %7 = vector.load %arg4[%c0_5, %c0_6] : memref<8x8xbf16, #tpu.memory_space<vmem>>, vector<8x8xbf16>
    %8 = arith.truncf %6 : vector<8x128xf32> to vector<8x128xbf16>
    %cst_7 = arith.constant dense<0.000000e+00> : vector<8x128xf32>
    %9 = tpu.matmul %7, %8, %cst_7 {dimension_numbers = #tpu.dot_dimension_numbers<[1], [0], [0], [1], [0, 0, 1, 1], [], []>} : vector<8x8xbf16>, vector<8x128xbf16>, vector<8x128xf32> -> vector<8x128xf32>
    %c0_8 = arith.constant 0 : index
    %c0_9 = arith.constant 0 : index
    %10 = vector.load %arg5[%c0_8, %c0_9] : memref<8x1xf32, #tpu.memory_space<vmem>>, vector<8x1xf32>
    %11 = vector.broadcast %10 : vector<8x1xf32> to vector<8x128xf32>
    %12 = arith.addf %9, %11 : vector<8x128xf32>
    %13 = math.tanh %12 : vector<8x128xf32>
    %c0_10 = arith.constant 0 : index
    %c0_11 = arith.constant 0 : index
    %14 = vector.load %arg6[%c0_10, %c0_11] : memref<4x8xbf16, #tpu.memory_space<vmem>>, vector<4x8xbf16>
    %15 = arith.truncf %13 : vector<8x128xf32> to vector<8x128xbf16>
    %cst_12 = arith.constant dense<0.000000e+00> : vector<4x128xf32>
    %16 = tpu.matmul %14, %15, %cst_12 {dimension_numbers = #tpu.dot_dimension_numbers<[1], [0], [0], [1], [0, 0, 1, 1], [], []>} : vector<4x8xbf16>, vector<8x128xbf16>, vector<4x128xf32> -> vector<4x128xf32>
    %c0_13 = arith.constant 0 : index
    %c0_14 = arith.constant 0 : index
    %17 = vector.load %arg7[%c0_13, %c0_14] : memref<4x1xf32, #tpu.memory_space<vmem>>, vector<4x1xf32>
    %18 = vector.broadcast %17 : vector<4x1xf32> to vector<4x128xf32>
    %19 = arith.addf %16, %18 : vector<4x128xf32>
    %c0_15 = arith.constant 0 : index
    %c0_16 = arith.constant 0 : index
    %20 = vector.load %arg8[%c0_15, %c0_16] : memref<4x128xf32, #tpu.memory_space<vmem>>, vector<4x128xf32>
    tpu.vector_store %arg8[%c0_15, %c0_16], %19 {strides = array<i32>} : memref<4x128xf32, #tpu.memory_space<vmem>>, vector<4x128xf32>,
    return
  }
  func.func @transform_0(%arg0: i32) -> (i32, i32) {
    %c0_i32 = arith.constant 0 : i32
    %c0_i32_0 = arith.constant 0 : i32
    return %c0_i32, %arg0 : i32, i32
  }
  func.func @transform_1(%arg0: i32) -> (i32, i32) {
    %c0_i32 = arith.constant 0 : i32
    %c0_i32_0 = arith.constant 0 : i32
    %c0_i32_1 = arith.constant 0 : i32
    return %c0_i32, %c0_i32_0 : i32, i32
  }
  func.func @transform_2(%arg0: i32) -> (i32, i32) {
    %c0_i32 = arith.constant 0 : i32
    %c0_i32_0 = arith.constant 0 : i32
    %c0_i32_1 = arith.constant 0 : i32
    return %c0_i32, %c0_i32_0 : i32, i32
  }
  func.func @transform_3(%arg0: i32) -> (i32, i32) {
    %c0_i32 = arith.constant 0 : i32
    %c0_i32_0 = arith.constant 0 : i32
    %c0_i32_1 = arith.constant 0 : i32
    return %c0_i32, %c0_i32_0 : i32, i32
  }
  func.func @transform_4(%arg0: i32) -> (i32, i32) {
    %c0_i32 = arith.constant 0 : i32
    %c0_i32_0 = arith.constant 0 : i32
    %c0_i32_1 = arith.constant 0 : i32
    return %c0_i32, %c0_i32_0 : i32, i32
  }
  func.func @transform_5(%arg0: i32) -> (i32, i32) {
    %c0_i32 = arith.constant 0 : i32
    %c0_i32_0 = arith.constant 0 : i32
    %c0_i32_1 = arith.constant 0 : i32
    return %c0_i32, %c0_i32_0 : i32, i32
  }
  func.func @transform_6(%arg0: i32) -> (i32, i32) {
    %c0_i32 = arith.constant 0 : i32
    %c0_i32_0 = arith.constant 0 : i32
    %c0_i32_1 = arith.constant 0 : i32
    return %c0_i32, %c0_i32_0 : i32, i32
  }
  func.func @transform_7(%arg0: i32) -> (i32, i32) {
    %c0_i32 = arith.constant 0 : i32
    %c0_i32_0 = arith.constant 0 : i32
    return %c0_i32, %arg0 : i32, i32
  }
}

</mosaic_0001>

<llo_original>
// kernel: tpu_custom_call.1
$region0: #{tpu_custom_call.1}
  #allocation0 [shape = 'u32[]', space=smem, size = 0x4, offset = 0x4, fixed_abs, tag = 'smem constant byte address 0x4 - core index']
  #allocation1 [shape = 'u32[144,128]{1,0:T(1,128)}', space=vmem, size = 0x12000, scoped, tag = 'internal scratch']
  %s0 = inlined_call_operand.vmem [shape: bf16[5,128], index: 0, kind: input, shape index: {}]
  %s1 = inlined_call_operand.vmem [shape: bf16[8,5], index: 1, kind: input, shape index: {}]
  %s2 = inlined_call_operand.vmem [shape: f32[8,1], index: 2, kind: input, shape index: {}]
  %s3 = inlined_call_operand.vmem [shape: bf16[8,8], index: 3, kind: input, shape index: {}]
  %s4 = inlined_call_operand.vmem [shape: f32[8,1], index: 4, kind: input, shape index: {}]
  %s5 = inlined_call_operand.vmem [shape: bf16[4,8], index: 5, kind: input, shape index: {}]
  %s6 = inlined_call_operand.vmem [shape: f32[4,1], index: 6, kind: input, shape index: {}]
  %s7 = inlined_call_operand.hbm [shape: f32[4,128], index: 7, kind: output, shape index: {}]
  %s8 = sld [smem:[#allocation0]]
  $region38: #{tpu_custom_call.1} parent=0
    _
  %s10 = ssub.s32 1, %s8
  %s11 = scalar_select 0, %s10, %s8
  $region1: #{tpu_custom_call.1} parent=0
    #allocation2 [shape = 'u8[2048]{0}', space=vmem, size = 0x800, scoped, tag = 'output window, operand 0, single buffered']
    #allocation3 [shape = 's32[1]{0}', space=sflag, size = 0x4, scoped, tag = 'scoped memory for tpu_custom_call.1']
    %12 = vsyncpa [#allocation3], 0
    // Predicated region
    $region2: #{tpu_custom_call.1} parent=1 // pred_check
      _
    $region3: #{tpu_custom_call.1} parent=1 // pred_check_branch
      %14 = sbr.rel (0) target = $region5
    $region4: #{tpu_custom_call.1} parent=1 // pred_region
      _
    $region5: #{tpu_custom_call.1} parent=1 // pred_fallthru
      _
    // Predicated region
    $region6: #{tpu_custom_call.1} parent=1 // pred_check
      _
    $region7: #{tpu_custom_call.1} parent=1 // pred_check_branch
      %16 = sbr.rel (0) target = $region9
    $region8: #{tpu_custom_call.1} parent=1 // pred_region
      _
    $region9: #{tpu_custom_call.1} parent=1 // pred_fallthru
      _
    // Predicated region
    $region10: #{tpu_custom_call.1} parent=1 // pred_check
      _
    $region11: #{tpu_custom_call.1} parent=1 // pred_check_branch
      %18 = sbr.rel (0) target = $region13
    $region12: #{tpu_custom_call.1} parent=1 // pred_region
      _
    $region13: #{tpu_custom_call.1} parent=1 // pred_fallthru
      _
    // Predicated region
    $region14: #{tpu_custom_call.1} parent=1 // pred_check
      _
    $region15: #{tpu_custom_call.1} parent=1 // pred_check_branch
      %20 = sbr.rel (0) target = $region17
    $region16: #{tpu_custom_call.1} parent=1 // pred_region
      _
    $region17: #{tpu_custom_call.1} parent=1 // pred_fallthru
      _
    // Predicated region
    $region18: #{tpu_custom_call.1} parent=1 // pred_check
      _
    $region19: #{tpu_custom_call.1} parent=1 // pred_check_branch
      %22 = sbr.rel (0) target = $region21
    $region20: #{tpu_custom_call.1} parent=1 // pred_region
      _
    $region21: #{tpu_custom_call.1} parent=1 // pred_fallthru
      _
    // Predicated region
    $region22: #{tpu_custom_call.1} parent=1 // pred_check
      _
    $region23: #{tpu_custom_call.1} parent=1 // pred_check_branch
      %24 = sbr.rel (0) target = $region25
    $region24: #{tpu_custom_call.1} parent=1 // pred_region
      _
    $region25: #{tpu_custom_call.1} parent=1 // pred_fallthru
      _
    // Predicated region
    $region26: #{tpu_custom_call.1} parent=1 // pred_check
      _
    $region27: #{tpu_custom_call.1} parent=1 // pred_check_branch
      %26 = sbr.rel (0) target = $region29
    $region28: #{tpu_custom_call.1} parent=1 // pred_region
      _
    $region29: #{tpu_custom_call.1} parent=1 // pred_fallthru
      _
    %v28 = vld [vmem:[%s0] sm:$0x7]
    %v29 = vld [vmem:[%s1] sm:$0xf]
    %v30 = vld [vmem:[%s2] sm:$0xff]
    %32 = vset.pattern.permute.xlu0 0
    %33 = vperm.xlu0 %32, %v30
    %v34 = vpop.permute.xlu0 %33
    %vm36 = vcmask 39936
    %v38 = vsel %vm36, %v29, 0
    %vm40 = vcmask 1041408
    %vm41 = vcmask 1042432
    %v42 = vsel %vm40, 4294967295, 65535
    %v43 = vsel %vm41, %v42, 0
    %v45 = vand.u32 %v28, %v43
    %47 = vmatprep.subr.bf16.mxu0 0
    %48 = vmatpush1.bf16.msra.mxu0 %v45
    %49 = vmatprep.subr.bf16.mxu0 0
    %50 = vmatpush1.bf16.msra.mxu0 0
    %51 = vmatprep.subr.bf16.mxu0 0
    %52 = vmatpush1.bf16.msra.mxu0 0
    %53 = vmatprep.subr.bf16.mxu0 0
    %54 = vmatpush1.bf16.msra.mxu0 0
    %55 = vmatprep.subr.bf16.mxu0 0
    %56 = vmatpush1.bf16.msra.mxu0 0
    %57 = vmatprep.subr.bf16.mxu0 0
    %58 = vmatpush1.bf16.msra.mxu0 0
    %59 = vmatprep.subr.bf16.mxu0 0
    %60 = vmatpush1.bf16.msra.mxu0 0
    %61 = vmatprep.subr.bf16.mxu0 0
    %62 = vmatpush1.bf16.msra.mxu0 0
    %63 = vmatprep.subr.bf16.mxu0 0
    %64 = vmatpush1.bf16.msra.mxu0 0
    %65 = vmatprep.subr.bf16.mxu0 0
    %66 = vmatpush1.bf16.msra.mxu0 0
    %67 = vmatprep.subr.bf16.mxu0 0
    %68 = vmatpush1.bf16.msra.mxu0 0
    %69 = vmatprep.subr.bf16.mxu0 0
    %70 = vmatpush1.bf16.msra.mxu0 0
    %71 = vmatprep.subr.bf16.mxu0 0
    %72 = vmatpush1.bf16.msra.mxu0 0
    %73 = vmatprep.subr.bf16.mxu0 0
    %74 = vmatpush1.bf16.msra.mxu0 0
    %75 = vmatprep.subr.bf16.mxu0 0
    %76 = vmatpush1.bf16.msra.mxu0 0
    %77 = vmatprep.subr.bf16.mxu0 0
    %78 = vmatpush1.bf16.msra.mxu0 0
    %79 = vmatprep.mubr.bf16.mxu0 0
    %80 = vmatmul.mubr.bf16.gmra.mrb[0].mxu0 %v38
    %v81 = vpop.f32.mrb[0].mxu0
    %v82 = vadd.f32 %v34, %v81
    %v83 = vpop.f32.mrb[0].mxu0
    %v84 = vpop.f32.mrb[0].mxu0
    %v85 = vpop.f32.mrb[0].mxu0
    %86 = vdwg.mxu0
    %v87 = vtanh.pop %v82
    %v88 = vld [vmem:[%s3] sm:$0xf]
    %v89 = vpack.c.bf16 %v87, %v87
    %v90 = vld [vmem:[%s4] sm:$0xff]
    %92 = vset.pattern.permute.xlu0 0
    %93 = vperm.xlu0 %92, %v90
    %v94 = vpop.permute.xlu0 %93
    %vm96 = vcmask 64512
    %v98 = vsel %vm96, %v88, 0
    %vm100 = vcmask 1043456
    %v102 = vsel %vm100, %v89, 0
    %104 = vmatprep.subr.bf16.mxu0 0
    %105 = vmatpush1.bf16.msra.mxu0 %v102
    %106 = vmatprep.subr.bf16.mxu0 0
    %107 = vmatpush1.bf16.msra.mxu0 0
    %108 = vmatprep.subr.bf16.mxu0 0
    %109 = vmatpush1.bf16.msra.mxu0 0
    %110 = vmatprep.subr.bf16.mxu0 0
    %111 = vmatpush1.bf16.msra.mxu0 0
    %112 = vmatprep.subr.bf16.mxu0 0
    %113 = vmatpush1.bf16.msra.mxu0 0
    %114 = vmatprep.subr.bf16.mxu0 0
    %115 = vmatpush1.bf16.msra.mxu0 0
    %116 = vmatprep.subr.bf16.mxu0 0
    %117 = vmatpush1.bf16.msra.mxu0 0
    %118 = vmatprep.subr.bf16.mxu0 0
    %119 = vmatpush1.bf16.msra.mxu0 0
    %120 = vmatprep.subr.bf16.mxu0 0
    %121 = vmatpush1.bf16.msra.mxu0 0
    %122 = vmatprep.subr.bf16.mxu0 0
    %123 = vmatpush1.bf16.msra.mxu0 0
    %124 = vmatprep.subr.bf16.mxu0 0
    %125 = vmatpush1.bf16.msra.mxu0 0
    %126 = vmatprep.subr.bf16.mxu0 0
    %127 = vmatpush1.bf16.msra.mxu0 0
    %128 = vmatprep.subr.bf16.mxu0 0
    %129 = vmatpush1.bf16.msra.mxu0 0
    %130 = vmatprep.subr.bf16.mxu0 0
    %131 = vmatpush1.bf16.msra.mxu0 0
    %132 = vmatprep.subr.bf16.mxu0 0
    %133 = vmatpush1.bf16.msra.mxu0 0
    %134 = vmatprep.subr.bf16.mxu0 0
    %135 = vmatpush1.bf16.msra.mxu0 0
    %136 = vmatprep.mubr.bf16.mxu0 0
    %137 = vmatmul.mubr.bf16.gmra.mrb[0].mxu0 %v98
    %v138 = vpop.f32.mrb[0].mxu0
    %v139 = vadd.f32 %v94, %v138
    %v140 = vpop.f32.mrb[0].mxu0
    %v141 = vpop.f32.mrb[0].mxu0
    %v142 = vpop.f32.mrb[0].mxu0
    %143 = vdwg.mxu0
    %v144 = vtanh.pop %v139
    %v145 = vld [vmem:[%s5] sm:$0x3]
    %v146 = vpack.c.bf16 %v144, %v144
    %v147 = vld [vmem:[%s6] sm:$0xf]
    %149 = vset.pattern.permute.xlu0 0
    %150 = vperm.xlu0 %149, %v147
    %v151 = vpop.permute.xlu0 %150
    %v154 = vsel %vm96, %v145, 0
    %v157 = vsel %vm100, %v146, 0
    %159 = vmatprep.subr.bf16.mxu0 0
    %160 = vmatpush1.bf16.msra.mxu0 %v157
    %161 = vmatprep.subr.bf16.mxu0 0
    %162 = vmatpush1.bf16.msra.mxu0 0
    %163 = vmatprep.subr.bf16.mxu0 0
    %164 = vmatpush1.bf16.msra.mxu0 0
    %165 = vmatprep.subr.bf16.mxu0 0
    %166 = vmatpush1.bf16.msra.mxu0 0
    %167 = vmatprep.subr.bf16.mxu0 0
    %168 = vmatpush1.bf16.msra.mxu0 0
    %169 = vmatprep.subr.bf16.mxu0 0
    %170 = vmatpush1.bf16.msra.mxu0 0
    %171 = vmatprep.subr.bf16.mxu0 0
    %172 = vmatpush1.bf16.msra.mxu0 0
    %173 = vmatprep.subr.bf16.mxu0 0
    %174 = vmatpush1.bf16.msra.mxu0 0
    %175 = vmatprep.subr.bf16.mxu0 0
    %176 = vmatpush1.bf16.msra.mxu0 0
    %177 = vmatprep.subr.bf16.mxu0 0
    %178 = vmatpush1.bf16.msra.mxu0 0
    %179 = vmatprep.subr.bf16.mxu0 0
    %180 = vmatpush1.bf16.msra.mxu0 0
    %181 = vmatprep.subr.bf16.mxu0 0
    %182 = vmatpush1.bf16.msra.mxu0 0
    %183 = vmatprep.subr.bf16.mxu0 0
    %184 = vmatpush1.bf16.msra.mxu0 0
    %185 = vmatprep.subr.bf16.mxu0 0
    %186 = vmatpush1.bf16.msra.mxu0 0
    %187 = vmatprep.subr.bf16.mxu0 0
    %188 = vmatpush1.bf16.msra.mxu0 0
    %189 = vmatprep.subr.bf16.mxu0 0
    %190 = vmatpush1.bf16.msra.mxu0 0
    %191 = vmatprep.mubr.bf16.mxu0 0
    %192 = vmatmul.mubr.bf16.gmra.mrb[0].mxu0 %v154
    %v193 = vpop.f32.mrb[0].mxu0
    %v194 = vadd.f32 %v151, %v193
    %v195 = vpop.f32.mrb[0].mxu0
    %v196 = vpop.f32.mrb[0].mxu0
    %v197 = vpop.f32.mrb[0].mxu0
    %198 = vdwg.mxu0
    %199 = vst [vmem:[#allocation2] sm:$0xf] %v194
    // Predicated region
    $region30: #{tpu_custom_call.1} parent=1 // pred_check
      _
    $region31: #{tpu_custom_call.1} parent=1 // pred_check_branch
      %201 = sbr.rel (0) target = $region33
    $region32: #{tpu_custom_call.1} parent=1 // pred_region
      %s203 = ssub.s32 64, 64
      %204 = vsyncadd [#allocation3], %s203
      %s206 = sshll.u32 [#allocation2], 4
      %s207 = int_to_ptr.vmem [resolvable:$true] %s206
      %209 = dma.vmem_to_hbm [thread:$0]  %s207, 64, %s7, [#allocation3]
    $region33: #{tpu_custom_call.1} parent=1 // pred_fallthru
      _
    // Predicated region
    $region34: #{tpu_custom_call.1} parent=1 // pred_check
      _
    $region35: #{tpu_custom_call.1} parent=1 // pred_check_branch
      %211 = sbr.rel (0) target = $region37
    $region36: #{tpu_custom_call.1} parent=1 // pred_region
      %212 = dma.done [#allocation3], 64
    $region37: #{tpu_custom_call.1} parent=1 // pred_fallthru
      _
    %213 = vsyncpa [#allocation3], 1

</llo_original>
